<compile_context>
chip_gen: v5e
topology: v5e:2x2
jax: 0.10.0
libtpu: 0.0.40
codegen_flags: <defaults>
</compile_context>

<pallas_src>
import functools
import math

import jax
import jax.numpy as jnp
from jax.experimental import pallas as pl
from jax.experimental.pallas import tpu as pltpu

LANE = 128
BF16_SUBLANE = 16
VMEM_LIMIT = 64 << 20  # explicit; v5e scoped default is only 16 MiB


def _round_up(x, m):
    return ((x + m - 1) // m) * m


# --------------------------------------------------------------------------
# Kernels
# --------------------------------------------------------------------------
def _xw_kernel(x_ref, w_ref, o_ref):
    """Row tile of the feature transform: (tm, K) @ (K, wp) -> bf16 (tm, wp)."""
    o_ref[...] = jnp.dot(
        x_ref[...], w_ref[...], preferred_element_type=jnp.float32
    ).astype(o_ref.dtype)


def _agg_kernel(a_ref, xw_ref, b_ref, o_ref, acc_ref, *, activation):
    """K-tiled aggregation: acc += A[rows, kslab] @ XW[kslab]; finalize at last K."""
    k = pl.program_id(1)

    @pl.when(k == 0)
    def _():
        acc_ref[...] = jnp.zeros_like(acc_ref)

    acc_ref[...] += jnp.dot(
        a_ref[...], xw_ref[...], preferred_element_type=jnp.float32
    )

    @pl.when(k == pl.num_programs(1) - 1)
    def _():
        z = acc_ref[...] + b_ref[...]
        if activation == "relu":
            o_ref[...] = jnp.maximum(z, 0.0).astype(o_ref.dtype)
        else:
            # log_softmax over class lanes.  Padded class lanes are -1e30 via
            # the bias, so no iota/where masking is needed in-kernel.
            z_max = jnp.max(z, axis=1, keepdims=True)
            z_shift = z - z_max
            lse = jnp.log(jnp.sum(jnp.exp(z_shift), axis=1, keepdims=True))
            o_ref[...] = (z_shift - lse).astype(o_ref.dtype)


# --------------------------------------------------------------------------
# pallas_call wrappers
# --------------------------------------------------------------------------
def _feature_matmul(x_p, w_p, *, tm):
    n_pad, k_in = x_p.shape
    wp = w_p.shape[1]
    cost = pl.CostEstimate(
        flops=2 * n_pad * k_in * wp,
        transcendentals=0,
        bytes_accessed=2 * (n_pad * k_in + k_in * wp + n_pad * wp),
    )
    return pl.pallas_call(
        _xw_kernel,
        out_shape=jax.ShapeDtypeStruct((n_pad, wp), jnp.bfloat16),
        grid_spec=pltpu.PrefetchScalarGridSpec(
            num_scalar_prefetch=0,
            grid=(n_pad // tm,),
            in_specs=[
                pl.BlockSpec((tm, k_in), lambda i: (i, 0)),   # X / H row tile
                pl.BlockSpec((k_in, wp), lambda i: (0, 0)),   # W (grid-invariant)
            ],
            out_specs=pl.BlockSpec((tm, wp), lambda i: (i, 0)),
        ),
        compiler_params=pltpu.CompilerParams(
            dimension_semantics=("parallel",),
            vmem_limit_bytes=VMEM_LIMIT,
        ),
        cost_estimate=cost,
    )(x_p, w_p)


def _aggregate(a_p, xw_p, b_p, *, tm, tk, out_dtype, activation):
    n_pad = a_p.shape[0]
    wp = xw_p.shape[1]
    out_bytes = jnp.dtype(out_dtype).itemsize * n_pad * wp
    cost = pl.CostEstimate(
        flops=2 * n_pad * n_pad * wp,
        transcendentals=(n_pad * wp if activation == "log_softmax" else 0),
        bytes_accessed=2 * (n_pad * n_pad + n_pad * wp) + 4 * wp + out_bytes,
    )
    return pl.pallas_call(
        functools.partial(_agg_kernel, activation=activation),
        out_shape=jax.ShapeDtypeStruct((n_pad, wp), out_dtype),
        grid_spec=pltpu.PrefetchScalarGridSpec(
            num_scalar_prefetch=0,
            grid=(n_pad // tm, n_pad // tk),
            in_specs=[
                pl.BlockSpec((tm, tk), lambda i, k: (i, k)),   # A row/col tile
                pl.BlockSpec((tk, wp), lambda i, k: (k, 0)),   # XW K-slab
                pl.BlockSpec((1, wp), lambda i, k: (0, 0)),    # bias (invariant)
            ],
            out_specs=pl.BlockSpec((tm, wp), lambda i, k: (i, 0)),
            scratch_shapes=[pltpu.VMEM((tm, wp), jnp.float32)],
        ),
        compiler_params=pltpu.CompilerParams(
            dimension_semantics=("parallel", "arbitrary"),
            vmem_limit_bytes=VMEM_LIMIT,
        ),
        cost_estimate=cost,
    )(a_p, xw_p, b_p)


# --------------------------------------------------------------------------
# Adjacency normalization (plain JAX glue)
# --------------------------------------------------------------------------
def _build_norm_adj_padded(edge_index, num_nodes, n_pad):
    """D^-1/2 (A + I) D^-1/2 built directly into the padded bf16 buffer.

    Matches PyG GCNConv default normalization.  Padded rows/cols stay exactly
    zero (their degree is 0 -> scale 0).  Duplicate edges accumulate, same as
    densifying a raw (non-deduplicated) edge_index.
    """
    src, dst = edge_index[0], edge_index[1]
    loops = jnp.arange(num_nodes, dtype=src.dtype)
    src = jnp.concatenate([src, loops])
    dst = jnp.concatenate([dst, loops])
    adj = jnp.zeros((n_pad, n_pad), jnp.float32).at[dst, src].add(1.0)
    deg = jnp.sum(adj, axis=1)                      # 0 for padded rows
    safe = jnp.where(deg > 0.0, deg, 1.0)
    dinv_sqrt = jnp.where(deg > 0.0, jax.lax.rsqrt(safe), 0.0)
    return (dinv_sqrt[:, None] * adj * dinv_sqrt[None, :]).astype(jnp.bfloat16)


# --------------------------------------------------------------------------
# Forward
# --------------------------------------------------------------------------
@functools.partial(jax.jit, static_argnames=("row_tile", "k_tile"))
def gcn_forward(x, edge_index, w1, b1, w2, b2, row_tile=512, k_tile=1024):
    assert row_tile % LANE == 0, "row_tile must be a multiple of 128"
    assert k_tile % row_tile == 0, "k_tile must be a multiple of row_tile"

    n, f_in = x.shape
    hid = w1.shape[1]
    c = w2.shape[1]

    hp = _round_up(max(hid, LANE), LANE)   # lane-dense hidden width
    cp = _round_up(max(c, LANE), LANE)     # lane-dense class width
    fp = _round_up(max(f_in, LANE), LANE)  # lane-dense / MXU-aligned feature K

    # Node padding / tile selection (tm | n_pad and tk | n_pad by construction).
    n16 = _round_up(n, BF16_SUBLANE)
    if n16 <= row_tile:
        tm = tk = n_pad = n16
    else:
        tm = row_tile
        n_pad = _round_up(n16, tm)
        tk = math.gcd(n_pad, k_tile)       # >= tm, divides n_pad, <= k_tile

    # bf16 MXU operands; zero padding is inert (padded hidden/class lanes stay
    # exactly 0 through both layers, padded node rows/cols of A_hat are 0).
    a_p = _build_norm_adj_padded(edge_index, n, n_pad)
    x_p = jnp.zeros((n_pad, fp), jnp.bfloat16).at[:n, :f_in].set(
        x.astype(jnp.bfloat16))
    w1_p = jnp.zeros((fp, hp), jnp.bfloat16).at[:f_in, :hid].set(
        w1.astype(jnp.bfloat16))
    b1_p = jnp.zeros((1, hp), jnp.float32).at[:, :hid].set(
        b1.reshape(1, hid).astype(jnp.float32))
    w2_p = jnp.zeros((hp, cp), jnp.bfloat16).at[:hid, :c].set(
        w2.astype(jnp.bfloat16))
    # Padded class lanes carry -1e30 via the bias (aggregation gives exactly 0
    # there), so the in-kernel log_softmax ignores them for free.
    b2_p = jnp.full((1, cp), -1e30, jnp.float32).at[:, :c].set(
        b2.reshape(1, c).astype(jnp.float32))

    # ---- layer 1: relu(A_hat @ (X @ W1) + b1) ----
    xw1 = _feature_matmul(x_p, w1_p, tm=tm)                       # (n_pad, hp) bf16
    h = _aggregate(a_p, xw1, b1_p, tm=tm, tk=tk,
                   out_dtype=jnp.bfloat16, activation="relu")     # (n_pad, hp) bf16
    # (dropout: identity in eval mode)

    # ---- layer 2: log_softmax(A_hat @ (H @ W2) + b2) ----
    hw2 = _feature_matmul(h, w2_p, tm=tm)                         # (n_pad, cp) bf16
    out = _aggregate(a_p, hw2, b2_p, tm=tm, tk=tk,
                     out_dtype=jnp.float32, activation="log_softmax")

    return out[:n, :c]


if __name__ == "__main__":
    key = jax.random.PRNGKey(0)
    N = 64       # nodes
    F_IN = 32    # num_features
    HID = 16     # hidden (fixed by module)
    C = 8        # num_classes
    E = 256      # edges

    k_x, k_e1, k_e2, k_w1, k_w2 = jax.random.split(key, 5)

    x = jax.random.normal(k_x, (N, F_IN), dtype=jnp.float32)
    edge_index = jnp.stack([
        jax.random.randint(k_e1, (E,), 0, N),
        jax.random.randint(k_e2, (E,), 0, N),
    ]).astype(jnp.int32)

    # GCNConv-like params: weight (in, out), bias (out,)
    w1 = jax.random.normal(k_w1, (F_IN, HID), dtype=jnp.float32) * (1.0 / jnp.sqrt(F_IN))
    b1 = jnp.zeros((HID,), dtype=jnp.float32)
    w2 = jax.random.normal(k_w2, (HID, C), dtype=jnp.float32) * (1.0 / jnp.sqrt(HID))
    b2 = jnp.zeros((C,), dtype=jnp.float32)

    out = gcn_forward(x, edge_index, w1, b1, w2, b2)
    out = jax.block_until_ready(out)

    # sanity: shape + log_softmax rows sum to 1 in prob space
    assert out.shape == (N, C)
    assert bool(jnp.allclose(jnp.sum(jnp.exp(out), axis=1), 1.0, atol=1e-3))

    print("KERNEL_OK")
</pallas_src>

<mosaic_0001>
module attributes {stable_mosaic.version = 11 : i64} {
  func.func @_xw_kernel(%arg0: i32, %arg1: memref<64x128xbf16, #tpu.memory_space<vmem>>, %arg2: memref<128x128xbf16, #tpu.memory_space<vmem>>, %arg3: memref<64x128xbf16, #tpu.memory_space<vmem>>) attributes {dimension_semantics = [#tpu.dimension_semantics<parallel>], iteration_bounds = array<i64: 1>, scalar_prefetch = 0 : i64, scratch_operands = 0 : i64, tpu.core_type = #tpu.core_type<tc>, window_params = [{transform_indices = @transform_0, window_bounds = array<i64: 64, 128>}, {pipeline_mode = #tpu.pipeline_mode<synchronous>, transform_indices = @transform_1, window_bounds = array<i64: 128, 128>}, {transform_indices = @transform_2, window_bounds = array<i64: 64, 128>}]} {
    %c0 = arith.constant 0 : index
    %c0_0 = arith.constant 0 : index
    %0 = vector.load %arg1[%c0, %c0_0] : memref<64x128xbf16, #tpu.memory_space<vmem>>, vector<64x128xbf16>
    %c0_1 = arith.constant 0 : index
    %c0_2 = arith.constant 0 : index
    %1 = vector.load %arg2[%c0_1, %c0_2] : memref<128x128xbf16, #tpu.memory_space<vmem>>, vector<128x128xbf16>
    %cst = arith.constant dense<0.000000e+00> : vector<64x128xf32>
    %2 = tpu.matmul %0, %1, %cst {dimension_numbers = #tpu.dot_dimension_numbers<[1], [0], [0], [1], [0, 0, 1, 1], [], []>} : vector<64x128xbf16>, vector<128x128xbf16>, vector<64x128xf32> -> vector<64x128xf32>
    %3 = arith.truncf %2 : vector<64x128xf32> to vector<64x128xbf16>
    %c0_3 = arith.constant 0 : index
    %c0_4 = arith.constant 0 : index
    %4 = vector.load %arg3[%c0_3, %c0_4] : memref<64x128xbf16, #tpu.memory_space<vmem>>, vector<64x128xbf16>
    tpu.vector_store %arg3[%c0_3, %c0_4], %3 {strides = array<i32>} : memref<64x128xbf16, #tpu.memory_space<vmem>>, vector<64x128xbf16>,
    return
  }
  func.func @transform_0(%arg0: i32) -> (i32, i32) {
    %c0_i32 = arith.constant 0 : i32
    %c0_i32_0 = arith.constant 0 : i32
    return %arg0, %c0_i32 : i32, i32
  }
  func.func @transform_1(%arg0: i32) -> (i32, i32) {
    %c0_i32 = arith.constant 0 : i32
    %c0_i32_0 = arith.constant 0 : i32
    %c0_i32_1 = arith.constant 0 : i32
    return %c0_i32, %c0_i32_0 : i32, i32
  }
  func.func @transform_2(%arg0: i32) -> (i32, i32) {
    %c0_i32 = arith.constant 0 : i32
    %c0_i32_0 = arith.constant 0 : i32
    return %arg0, %c0_i32 : i32, i32
  }
}

module attributes {stable_mosaic.version = 11 : i64} {
  func.func @_agg_kernel(%arg0: i32, %arg1: i32, %arg2: memref<64x64xbf16, #tpu.memory_space<vmem>>, %arg3: memref<64x128xbf16, #tpu.memory_space<vmem>>, %arg4: memref<1x128xf32, #tpu.memory_space<vmem>>, %arg5: memref<64x128xbf16, #tpu.memory_space<vmem>>, %arg6: memref<64x128xf32, #tpu.memory_space<vmem>>) attributes {dimension_semantics = [#tpu.dimension_semantics<parallel>, #tpu.dimension_semantics<arbitrary>], iteration_bounds = array<i64: 1, 1>, scalar_prefetch = 0 : i64, scratch_operands = 1 : i64, tpu.core_type = #tpu.core_type<tc>, window_params = [{transform_indices = @transform_0, window_bounds = array<i64: 64, 64>}, {transform_indices = @transform_1, window_bounds = array<i64: 64, 128>}, {pipeline_mode = #tpu.pipeline_mode<synchronous>, transform_indices = @transform_2, window_bounds = array<i64: 1, 128>}, {transform_indices = @transform_3, window_bounds = array<i64: 64, 128>}]} {
    %c0_i32 = arith.constant 0 : i32
    %0 = arith.cmpi eq, %arg1, %c0_i32 : i32
    %1 = arith.extui %0 : i1 to i32
    %c0_i32_0 = arith.constant 0 : i32
    %2 = arith.cmpi ne, %1, %c0_i32_0 : i32
    scf.if %2 {
      %cst_10 = arith.constant 0.000000e+00 : f32
      %12 = vector.broadcast %cst_10 : f32 to vector<64x128xf32>
      %c0_11 = arith.constant 0 : index
      %c0_12 = arith.constant 0 : index
      %13 = vector.load %arg6[%c0_11, %c0_12] : memref<64x128xf32, #tpu.memory_space<vmem>>, vector<64x128xf32>
      tpu.vector_store %arg6[%c0_11, %c0_12], %12 {strides = array<i32>} : memref<64x128xf32, #tpu.memory_space<vmem>>, vector<64x128xf32>,
    } else {
    }
    %c0 = arith.constant 0 : index
    %c0_1 = arith.constant 0 : index
    %3 = vector.load %arg6[%c0, %c0_1] : memref<64x128xf32, #tpu.memory_space<vmem>>, vector<64x128xf32>
    %c0_2 = arith.constant 0 : index
    %c0_3 = arith.constant 0 : index
    %4 = vector.load %arg2[%c0_2, %c0_3] : memref<64x64xbf16, #tpu.memory_space<vmem>>, vector<64x64xbf16>
    %c0_4 = arith.constant 0 : index
    %c0_5 = arith.constant 0 : index
    %5 = vector.load %arg3[%c0_4, %c0_5] : memref<64x128xbf16, #tpu.memory_space<vmem>>, vector<64x128xbf16>
    %cst = arith.constant dense<0.000000e+00> : vector<64x128xf32>
    %6 = tpu.matmul %4, %5, %cst {dimension_numbers = #tpu.dot_dimension_numbers<[1], [0], [0], [1], [0, 0, 1, 1], [], []>} : vector<64x64xbf16>, vector<64x128xbf16>, vector<64x128xf32> -> vector<64x128xf32>
    %7 = arith.addf %3, %6 : vector<64x128xf32>
    %c0_6 = arith.constant 0 : index
    %c0_7 = arith.constant 0 : index
    %8 = vector.load %arg6[%c0_6, %c0_7] : memref<64x128xf32, #tpu.memory_space<vmem>>, vector<64x128xf32>
    tpu.vector_store %arg6[%c0_6, %c0_7], %7 {strides = array<i32>} : memref<64x128xf32, #tpu.memory_space<vmem>>, vector<64x128xf32>,
    %c0_i32_8 = arith.constant 0 : i32
    %9 = arith.cmpi eq, %arg1, %c0_i32_8 : i32
    %10 = arith.extui %9 : i1 to i32
    %c0_i32_9 = arith.constant 0 : i32
    %11 = arith.cmpi ne, %10, %c0_i32_9 : i32
    scf.if %11 {
      %c0_10 = arith.constant 0 : index
      %c0_11 = arith.constant 0 : index
      %12 = vector.load %arg6[%c0_10, %c0_11] : memref<64x128xf32, #tpu.memory_space<vmem>>, vector<64x128xf32>
      %c0_12 = arith.constant 0 : index
      %c0_13 = arith.constant 0 : index
      %13 = vector.load %arg4[%c0_12, %c0_13] : memref<1x128xf32, #tpu.memory_space<vmem>>, vector<1x128xf32>
      %14 = vector.broadcast %13 : vector<1x128xf32> to vector<64x128xf32>
      %15 = arith.addf %12, %14 : vector<64x128xf32>
      %cst_14 = arith.constant 0.000000e+00 : f32
      %16 = vector.broadcast %cst_14 : f32 to vector<64x128xf32>
      %17 = arith.maximumf %15, %16 : vector<64x128xf32>
      %18 = arith.truncf %17 : vector<64x128xf32> to vector<64x128xbf16>
      %c0_15 = arith.constant 0 : index
      %c0_16 = arith.constant 0 : index
      %19 = vector.load %arg5[%c0_15, %c0_16] : memref<64x128xbf16, #tpu.memory_space<vmem>>, vector<64x128xbf16>
      tpu.vector_store %arg5[%c0_15, %c0_16], %18 {strides = array<i32>} : memref<64x128xbf16, #tpu.memory_space<vmem>>, vector<64x128xbf16>,
    } else {
    }
    return
  }
  func.func @transform_0(%arg0: i32, %arg1: i32) -> (i32, i32) {
    %c0_i32 = arith.constant 0 : i32
    return %arg0, %arg1 : i32, i32
  }
  func.func @transform_1(%arg0: i32, %arg1: i32) -> (i32, i32) {
    %c0_i32 = arith.constant 0 : i32
    %c0_i32_0 = arith.constant 0 : i32
    return %arg1, %c0_i32 : i32, i32
  }
  func.func @transform_2(%arg0: i32, %arg1: i32) -> (i32, i32) {
    %c0_i32 = arith.constant 0 : i32
    %c0_i32_0 = arith.constant 0 : i32
    %c0_i32_1 = arith.constant 0 : i32
    return %c0_i32, %c0_i32_0 : i32, i32
  }
  func.func @transform_3(%arg0: i32, %arg1: i32) -> (i32, i32) {
    %c0_i32 = arith.constant 0 : i32
    %c0_i32_0 = arith.constant 0 : i32
    return %arg0, %c0_i32 : i32, i32
  }
}

module attributes {stable_mosaic.version = 11 : i64} {
  func.func @_agg_kernel(%arg0: i32, %arg1: i32, %arg2: memref<64x64xbf16, #tpu.memory_space<vmem>>, %arg3: memref<64x128xbf16, #tpu.memory_space<vmem>>, %arg4: memref<1x128xf32, #tpu.memory_space<vmem>>, %arg5: memref<64x128xf32, #tpu.memory_space<vmem>>, %arg6: memref<64x128xf32, #tpu.memory_space<vmem>>) attributes {dimension_semantics = [#tpu.dimension_semantics<parallel>, #tpu.dimension_semantics<arbitrary>], iteration_bounds = array<i64: 1, 1>, scalar_prefetch = 0 : i64, scratch_operands = 1 : i64, tpu.core_type = #tpu.core_type<tc>, window_params = [{transform_indices = @transform_0, window_bounds = array<i64: 64, 64>}, {transform_indices = @transform_1, window_bounds = array<i64: 64, 128>}, {pipeline_mode = #tpu.pipeline_mode<synchronous>, transform_indices = @transform_2, window_bounds = array<i64: 1, 128>}, {transform_indices = @transform_3, window_bounds = array<i64: 64, 128>}]} {
    %c0_i32 = arith.constant 0 : i32
    %0 = arith.cmpi eq, %arg1, %c0_i32 : i32
    %1 = arith.extui %0 : i1 to i32
    %c0_i32_0 = arith.constant 0 : i32
    %2 = arith.cmpi ne, %1, %c0_i32_0 : i32
    scf.if %2 {
      %cst_10 = arith.constant 0.000000e+00 : f32
      %12 = vector.broadcast %cst_10 : f32 to vector<64x128xf32>
      %c0_11 = arith.constant 0 : index
      %c0_12 = arith.constant 0 : index
      %13 = vector.load %arg6[%c0_11, %c0_12] : memref<64x128xf32, #tpu.memory_space<vmem>>, vector<64x128xf32>
      tpu.vector_store %arg6[%c0_11, %c0_12], %12 {strides = array<i32>} : memref<64x128xf32, #tpu.memory_space<vmem>>, vector<64x128xf32>,
    } else {
    }
    %c0 = arith.constant 0 : index
    %c0_1 = arith.constant 0 : index
    %3 = vector.load %arg6[%c0, %c0_1] : memref<64x128xf32, #tpu.memory_space<vmem>>, vector<64x128xf32>
    %c0_2 = arith.constant 0 : index
    %c0_3 = arith.constant 0 : index
    %4 = vector.load %arg2[%c0_2, %c0_3] : memref<64x64xbf16, #tpu.memory_space<vmem>>, vector<64x64xbf16>
    %c0_4 = arith.constant 0 : index
    %c0_5 = arith.constant 0 : index
    %5 = vector.load %arg3[%c0_4, %c0_5] : memref<64x128xbf16, #tpu.memory_space<vmem>>, vector<64x128xbf16>
    %cst = arith.constant dense<0.000000e+00> : vector<64x128xf32>
    %6 = tpu.matmul %4, %5, %cst {dimension_numbers = #tpu.dot_dimension_numbers<[1], [0], [0], [1], [0, 0, 1, 1], [], []>} : vector<64x64xbf16>, vector<64x128xbf16>, vector<64x128xf32> -> vector<64x128xf32>
    %7 = arith.addf %3, %6 : vector<64x128xf32>
    %c0_6 = arith.constant 0 : index
    %c0_7 = arith.constant 0 : index
    %8 = vector.load %arg6[%c0_6, %c0_7] : memref<64x128xf32, #tpu.memory_space<vmem>>, vector<64x128xf32>
    tpu.vector_store %arg6[%c0_6, %c0_7], %7 {strides = array<i32>} : memref<64x128xf32, #tpu.memory_space<vmem>>, vector<64x128xf32>,
    %c0_i32_8 = arith.constant 0 : i32
    %9 = arith.cmpi eq, %arg1, %c0_i32_8 : i32
    %10 = arith.extui %9 : i1 to i32
    %c0_i32_9 = arith.constant 0 : i32
    %11 = arith.cmpi ne, %10, %c0_i32_9 : i32
    scf.if %11 {
      %c0_10 = arith.constant 0 : index
      %c0_11 = arith.constant 0 : index
      %12 = vector.load %arg6[%c0_10, %c0_11] : memref<64x128xf32, #tpu.memory_space<vmem>>, vector<64x128xf32>
      %c0_12 = arith.constant 0 : index
      %c0_13 = arith.constant 0 : index
      %13 = vector.load %arg4[%c0_12, %c0_13] : memref<1x128xf32, #tpu.memory_space<vmem>>, vector<1x128xf32>
      %14 = vector.broadcast %13 : vector<1x128xf32> to vector<64x128xf32>
      %15 = arith.addf %12, %14 : vector<64x128xf32>
      %cst_14 = arith.constant dense<0xFF800000> : vector<64xf32>
      %16 = vector.multi_reduction <maximumf>, %15, %cst_14 [1] : vector<64x128xf32> to vector<64xf32>
      %17 = vector.shape_cast %16 : vector<64xf32> to vector<64x1xf32>
      %18 = vector.broadcast %17 : vector<64x1xf32> to vector<64x128xf32>
      %19 = arith.subf %15, %18 : vector<64x128xf32>
      %20 = math.exp %19 : vector<64x128xf32>
      %cst_15 = arith.constant dense<0.000000e+00> : vector<64xf32>
      %21 = vector.multi_reduction <add>, %20, %cst_15 [1] : vector<64x128xf32> to vector<64xf32>
      %22 = vector.shape_cast %21 : vector<64xf32> to vector<64x1xf32>
      %23 = math.log %22 : vector<64x1xf32>
      %24 = vector.broadcast %23 : vector<64x1xf32> to vector<64x128xf32>
      %25 = arith.subf %19, %24 : vector<64x128xf32>
      %c0_16 = arith.constant 0 : index
      %c0_17 = arith.constant 0 : index
      %26 = vector.load %arg5[%c0_16, %c0_17] : memref<64x128xf32, #tpu.memory_space<vmem>>, vector<64x128xf32>
      tpu.vector_store %arg5[%c0_16, %c0_17], %25 {strides = array<i32>} : memref<64x128xf32, #tpu.memory_space<vmem>>, vector<64x128xf32>,
    } else {
    }
    return
  }
  func.func @transform_0(%arg0: i32, %arg1: i32) -> (i32, i32) {
    %c0_i32 = arith.constant 0 : i32
    return %arg0, %arg1 : i32, i32
  }
  func.func @transform_1(%arg0: i32, %arg1: i32) -> (i32, i32) {
    %c0_i32 = arith.constant 0 : i32
    %c0_i32_0 = arith.constant 0 : i32
    return %arg1, %c0_i32 : i32, i32
  }
  func.func @transform_2(%arg0: i32, %arg1: i32) -> (i32, i32) {
    %c0_i32 = arith.constant 0 : i32
    %c0_i32_0 = arith.constant 0 : i32
    %c0_i32_1 = arith.constant 0 : i32
    return %c0_i32, %c0_i32_0 : i32, i32
  }
  func.func @transform_3(%arg0: i32, %arg1: i32) -> (i32, i32) {
    %c0_i32 = arith.constant 0 : i32
    %c0_i32_0 = arith.constant 0 : i32
    return %arg0, %c0_i32 : i32, i32
  }
}

</mosaic_0001>

<llo_original>
// kernel: gcn_forward.5
$region0: #{gcn_forward.5}
  #allocation0 [shape = 'u32[]', space=smem, size = 0x4, offset = 0x4, fixed_abs, tag = 'smem constant byte address 0x4 - core index']
  #allocation1 [shape = 'u32[72,128]{1,0:T(1,128)}', space=vmem, size = 0x9000, scoped, tag = 'internal scratch']
  #allocation2 [shape = 'f32[64,128]{1,0:T(8,128)}', space=vmem, size = 0x8000, scoped, tag = 'scratch operand']
  %s0 = inlined_call_operand.vmem [shape: bf16[64,64], index: 0, kind: input, shape index: {}]
  %s1 = inlined_call_operand.vmem [shape: bf16[64,128], index: 1, kind: input, shape index: {}]
  %s2 = inlined_call_operand.vmem [shape: f32[1,128], index: 2, kind: input, shape index: {}]
  %s3 = inlined_call_operand.vmem [shape: bf16[64,128], index: 3, kind: output, shape index: {}]
  %s4 = sld [smem:[#allocation0]]
  $region30: #{gcn_forward.5} parent=0
    _
  %s6 = ssub.s32 1, %s4
  %s7 = scalar_select 0, %s6, %s4
  // Predicated region
  $region2: #{gcn_forward.5} parent=0 // pred_check
    _
  $region3: #{gcn_forward.5} parent=0 // pred_check_branch
    %9 = sbr.rel (0) target = $region5
  $region4: #{gcn_forward.5} parent=0 // pred_region
    _
  $region5: #{gcn_forward.5} parent=0 // pred_fallthru
    _
  // Predicated region
  $region6: #{gcn_forward.5} parent=0 // pred_check
    _
  $region7: #{gcn_forward.5} parent=0 // pred_check_branch
    %11 = sbr.rel (0) target = $region9
  $region8: #{gcn_forward.5} parent=0 // pred_region
    _
  $region9: #{gcn_forward.5} parent=0 // pred_fallthru
    _
  // Predicated region
  $region10: #{gcn_forward.5} parent=0 // pred_check
    _
  $region11: #{gcn_forward.5} parent=0 // pred_check_branch
    %13 = sbr.rel (0) target = $region13
  $region12: #{gcn_forward.5} parent=0 // pred_region
    _
  $region13: #{gcn_forward.5} parent=0 // pred_fallthru
    _
  %p15 = scmp.eq.s32.totalorder 0, 0
  // Predicated region
  $region14: #{gcn_forward.5} parent=0 // pred_check
    %p16 = pneg %p15
  $region15: #{gcn_forward.5} parent=0 // pred_check_branch
    %18 = sbr.rel (%p16) target = $region17
  $region16: #{gcn_forward.5} parent=0 // pred_region
    %19 = vst [vmem:[#allocation2] sm:$0xff] 0.0
    %20 = vst [vmem:[#allocation2 + $0x8] sm:$0xff] 0.0
    %21 = vst [vmem:[#allocation2 + $0x10] sm:$0xff] 0.0
    %22 = vst [vmem:[#allocation2 + $0x18] sm:$0xff] 0.0
    %23 = vst [vmem:[#allocation2 + $0x20] sm:$0xff] 0.0
    %24 = vst [vmem:[#allocation2 + $0x28] sm:$0xff] 0.0
    %25 = vst [vmem:[#allocation2 + $0x30] sm:$0xff] 0.0
    %26 = vst [vmem:[#allocation2 + $0x38] sm:$0xff] 0.0
  $region17: #{gcn_forward.5} parent=0 // pred_fallthru
    _
  %v27 = vld [vmem:[#allocation2] sm:$0xff]
  %v28 = vld [vmem:[#allocation2 + $0x8] sm:$0xff]
  %v29 = vld [vmem:[#allocation2 + $0x10] sm:$0xff]
  %v30 = vld [vmem:[#allocation2 + $0x18] sm:$0xff]
  %v31 = vld [vmem:[#allocation2 + $0x20] sm:$0xff]
  %v32 = vld [vmem:[#allocation2 + $0x28] sm:$0xff]
  %v33 = vld [vmem:[#allocation2 + $0x30] sm:$0xff]
  %v34 = vld [vmem:[#allocation2 + $0x38] sm:$0xff]
  %v35 = vld [vmem:[%s0] sm:$0xf]
  %v36 = vld [vmem:[%s0 + $0x4] sm:$0xf]
  %v37 = vld [vmem:[%s0 + $0x8] sm:$0xf]
  %v38 = vld [vmem:[%s0 + $0xc] sm:$0xf]
  %v39 = vld [vmem:[%s0 + $0x10] sm:$0xf]
  %v40 = vld [vmem:[%s0 + $0x14] sm:$0xf]
  %v41 = vld [vmem:[%s0 + $0x18] sm:$0xf]
  %v42 = vld [vmem:[%s0 + $0x1c] sm:$0xf]
  %v43 = vld [vmem:[%s1] sm:$0xf]
  %v44 = vld [vmem:[%s1 + $0x4] sm:$0xf]
  %v45 = vld [vmem:[%s1 + $0x8] sm:$0xf]
  %v46 = vld [vmem:[%s1 + $0xc] sm:$0xf]
  %v47 = vld [vmem:[%s1 + $0x10] sm:$0xf]
  %v48 = vld [vmem:[%s1 + $0x14] sm:$0xf]
  %v49 = vld [vmem:[%s1 + $0x18] sm:$0xf]
  %v50 = vld [vmem:[%s1 + $0x1c] sm:$0xf]
  %v59 = vunpack.c.l.b16 %v35
  %v60 = vunpack.c.l.b16 %v36
  %v61 = vunpack.c.l.b16 %v37
  %v62 = vunpack.c.l.b16 %v38
  %v63 = vunpack.c.l.b16 %v39
  %v64 = vunpack.c.l.b16 %v40
  %v65 = vunpack.c.l.b16 %v41
  %v66 = vunpack.c.l.b16 %v42
  %v67 = vpack.c.b16 %v60, %v59
  %v68 = vpack.c.b16 %v62, %v61
  %v69 = vpack.c.b16 %v64, %v63
  %v70 = vpack.c.b16 %v66, %v65
  %v79 = vunpack.c.l.b16 %v43
  %v80 = vunpack.c.l.b16 %v44
  %v81 = vunpack.c.l.b16 %v45
  %v82 = vunpack.c.l.b16 %v46
  %v83 = vunpack.c.l.b16 %v47
  %v84 = vunpack.c.l.b16 %v48
  %v85 = vunpack.c.l.b16 %v49
  %v86 = vunpack.c.l.b16 %v50
  %v87 = vpack.c.b16 %v80, %v79
  %v88 = vpack.c.b16 %v82, %v81
  %v89 = vpack.c.b16 %v84, %v83
  %v90 = vpack.c.b16 %v86, %v85
  %vm95 = vcmask 523264
  %v97 = vsel %vm95, %v67, 0
  %v100 = vsel %vm95, %v68, 0
  %v103 = vsel %vm95, %v69, 0
  %v106 = vsel %vm95, %v70, 0
  %108 = vmatpush.bf16.msra.mxu0 0
  %109 = vmatpush.bf16.msra.mxu0 0
  %110 = vmatpush.bf16.msra.mxu0 0
  %111 = vmatpush.bf16.msra.mxu0 0
  %112 = vmatpush.bf16.msra.mxu0 %v90
  %113 = vmatpush.bf16.msra.mxu0 %v89
  %114 = vmatpush.bf16.msra.mxu0 %v88
  %115 = vmatpush.bf16.msra.mxu0 %v87
  %116 = vmatmul.bf16.gmra.mxu0 %v97
  %v117 = vpop.f32.mrf.mxu0
  %v118 = vadd.f32 0.0, %v117
  %v119 = vpop.f32.mrf.mxu0
  %v120 = vadd.f32 0.0, %v119
  %121 = vmatmul.bf16.gmra.mxu0 %v100
  %v122 = vpop.f32.mrf.mxu0
  %v123 = vadd.f32 0.0, %v122
  %v124 = vpop.f32.mrf.mxu0
  %v125 = vadd.f32 0.0, %v124
  %126 = vmatmul.bf16.gmra.mxu0 %v103
  %v127 = vpop.f32.mrf.mxu0
  %v128 = vadd.f32 0.0, %v127
  %v129 = vpop.f32.mrf.mxu0
  %v130 = vadd.f32 0.0, %v129
  %131 = vmatmul.bf16.gmra.mxu0 %v106
  %v132 = vpop.f32.mrf.mxu0
  %v133 = vadd.f32 0.0, %v132
  %v134 = vpop.f32.mrf.mxu0
  %v135 = vadd.f32 0.0, %v134
  %136 = vdwg.mxu0
  %v137 = vadd.f32 %v27, %v118
  %v138 = vadd.f32 %v28, %v120
  %v139 = vadd.f32 %v29, %v123
  %v140 = vadd.f32 %v30, %v125
  %v141 = vadd.f32 %v31, %v128
  %v142 = vadd.f32 %v32, %v130
  %v143 = vadd.f32 %v33, %v133
  %v144 = vadd.f32 %v34, %v135
  %145 = vst [vmem:[#allocation2] sm:$0xff] %v137
  %146 = vst [vmem:[#allocation2 + $0x8] sm:$0xff] %v138
  %147 = vst [vmem:[#allocation2 + $0x10] sm:$0xff] %v139
  %148 = vst [vmem:[#allocation2 + $0x18] sm:$0xff] %v140
  %149 = vst [vmem:[#allocation2 + $0x20] sm:$0xff] %v141
  %150 = vst [vmem:[#allocation2 + $0x28] sm:$0xff] %v142
  %151 = vst [vmem:[#allocation2 + $0x30] sm:$0xff] %v143
  %152 = vst [vmem:[#allocation2 + $0x38] sm:$0xff] %v144
  // Predicated region
  $region18: #{gcn_forward.5} parent=0 // pred_check
    %p153 = pneg %p15
  $region19: #{gcn_forward.5} parent=0 // pred_check_branch
    %155 = sbr.rel (%p153) target = $region21
  $region20: #{gcn_forward.5} parent=0 // pred_region
    %v156 = vld [vmem:[#allocation2] sm:$0xff]
    %v157 = vld [vmem:[#allocation2 + $0x8] sm:$0xff]
    %v158 = vld [vmem:[#allocation2 + $0x10] sm:$0xff]
    %v159 = vld [vmem:[#allocation2 + $0x18] sm:$0xff]
    %v160 = vld [vmem:[#allocation2 + $0x20] sm:$0xff]
    %v161 = vld [vmem:[#allocation2 + $0x28] sm:$0xff]
    %v162 = vld [vmem:[#allocation2 + $0x30] sm:$0xff]
    %v163 = vld [vmem:[#allocation2 + $0x38] sm:$0xff]
    %v164 = vld [vmem:[%s2] sm:$0x1]
    %v166 = vperm.slane %v164, 0
    %v168 = vadd.f32 %v156, %v166
    %v169 = vadd.f32 %v157, %v166
    %v170 = vadd.f32 %v158, %v166
    %v171 = vadd.f32 %v159, %v166
    %v172 = vadd.f32 %v160, %v166
    %v173 = vadd.f32 %v161, %v166
    %v174 = vadd.f32 %v162, %v166
    %v175 = vadd.f32 %v163, %v166
    %v176 = vmax.f32 %v168, 0.0
    %v177 = vmax.f32 %v169, 0.0
    %v178 = vmax.f32 %v170, 0.0
    %v179 = vmax.f32 %v171, 0.0
    %v180 = vmax.f32 %v172, 0.0
    %v181 = vmax.f32 %v173, 0.0
    %v182 = vmax.f32 %v174, 0.0
    %v183 = vmax.f32 %v175, 0.0
    %v184 = vpack.c.bf16 %v176, %v176
    %v185 = vpack.c.bf16 %v177, %v177
    %v186 = vpack.c.bf16 %v178, %v178
    %v187 = vpack.c.bf16 %v179, %v179
    %v188 = vpack.c.bf16 %v180, %v180
    %v189 = vpack.c.bf16 %v181, %v181
    %v190 = vpack.c.bf16 %v182, %v182
    %v191 = vpack.c.bf16 %v183, %v183
    %192 = vst [vmem:[%s3] sm:$0xf] %v184
    %193 = vst [vmem:[%s3 + $0x4] sm:$0xf] %v185
    %194 = vst [vmem:[%s3 + $0x8] sm:$0xf] %v186
    %195 = vst [vmem:[%s3 + $0xc] sm:$0xf] %v187
    %196 = vst [vmem:[%s3 + $0x10] sm:$0xf] %v188
    %197 = vst [vmem:[%s3 + $0x14] sm:$0xf] %v189
    %198 = vst [vmem:[%s3 + $0x18] sm:$0xf] %v190
    %199 = vst [vmem:[%s3 + $0x1c] sm:$0xf] %v191
  $region21: #{gcn_forward.5} parent=0 // pred_fallthru
    _
  // Predicated region
  $region22: #{gcn_forward.5} parent=0 // pred_check
    _
  $region23: #{gcn_forward.5} parent=0 // pred_check_branch
    %201 = sbr.rel (0) target = $region25
  $region24: #{gcn_forward.5} parent=0 // pred_region
    _
  $region25: #{gcn_forward.5} parent=0 // pred_fallthru
    _
  // Predicated region
  $region26: #{gcn_forward.5} parent=0 // pred_check
    _
  $region27: #{gcn_forward.5} parent=0 // pred_check_branch
    %203 = sbr.rel (0) target = $region29
  $region28: #{gcn_forward.5} parent=0 // pred_region
    _
  $region29: #{gcn_forward.5} parent=0 // pred_fallthru
    _

// kernel: gcn_forward.4
$region0: #{gcn_forward.4}
  #allocation0 [shape = 'u32[]', space=smem, size = 0x4, offset = 0x4, fixed_abs, tag = 'smem constant byte address 0x4 - core index']
  #allocation1 [shape = 'u32[72,128]{1,0:T(1,128)}', space=vmem, size = 0x9000, scoped, tag = 'internal scratch']
  %s0 = inlined_call_operand.vmem [shape: bf16[64,128], index: 0, kind: input, shape index: {}]
  %s1 = inlined_call_operand.vmem [shape: bf16[128,128], index: 1, kind: input, shape index: {}]
  %s2 = inlined_call_operand.vmem [shape: bf16[64,128], index: 2, kind: output, shape index: {}]
  %s3 = sld [smem:[#allocation0]]
  $region18: #{gcn_forward.4} parent=0
    _
  %s5 = ssub.s32 1, %s3
  %s6 = scalar_select 0, %s5, %s3
  // Predicated region
  $region2: #{gcn_forward.4} parent=0 // pred_check
    _
  $region3: #{gcn_forward.4} parent=0 // pred_check_branch
    %8 = sbr.rel (0) target = $region5
  $region4: #{gcn_forward.4} parent=0 // pred_region
    _
  $region5: #{gcn_forward.4} parent=0 // pred_fallthru
    _
  // Predicated region
  $region6: #{gcn_forward.4} parent=0 // pred_check
    _
  $region7: #{gcn_forward.4} parent=0 // pred_check_branch
    %10 = sbr.rel (0) target = $region9
  $region8: #{gcn_forward.4} parent=0 // pred_region
    _
  $region9: #{gcn_forward.4} parent=0 // pred_fallthru
    _
  %v11 = vld [vmem:[%s0] sm:$0xf]
  %v12 = vld [vmem:[%s0 + $0x4] sm:$0xf]
  %v13 = vld [vmem:[%s0 + $0x8] sm:$0xf]
  %v14 = vld [vmem:[%s0 + $0xc] sm:$0xf]
  %v15 = vld [vmem:[%s0 + $0x10] sm:$0xf]
  %v16 = vld [vmem:[%s0 + $0x14] sm:$0xf]
  %v17 = vld [vmem:[%s0 + $0x18] sm:$0xf]
  %v18 = vld [vmem:[%s0 + $0x1c] sm:$0xf]
  %v19 = vld [vmem:[%s1] sm:$0xf]
  %v20 = vld [vmem:[%s1 + $0x4] sm:$0xf]
  %v21 = vld [vmem:[%s1 + $0x8] sm:$0xf]
  %v22 = vld [vmem:[%s1 + $0xc] sm:$0xf]
  %v23 = vld [vmem:[%s1 + $0x10] sm:$0xf]
  %v24 = vld [vmem:[%s1 + $0x14] sm:$0xf]
  %v25 = vld [vmem:[%s1 + $0x18] sm:$0xf]
  %v26 = vld [vmem:[%s1 + $0x1c] sm:$0xf]
  %v27 = vld [vmem:[%s1 + $0x20] sm:$0xf]
  %v28 = vld [vmem:[%s1 + $0x24] sm:$0xf]
  %v29 = vld [vmem:[%s1 + $0x28] sm:$0xf]
  %v30 = vld [vmem:[%s1 + $0x2c] sm:$0xf]
  %v31 = vld [vmem:[%s1 + $0x30] sm:$0xf]
  %v32 = vld [vmem:[%s1 + $0x34] sm:$0xf]
  %v33 = vld [vmem:[%s1 + $0x38] sm:$0xf]
  %v34 = vld [vmem:[%s1 + $0x3c] sm:$0xf]
  %v43 = vunpack.c.l.b16 %v11
  %v44 = vunpack.c.l.b16 %v12
  %v45 = vunpack.c.l.b16 %v13
  %v46 = vunpack.c.l.b16 %v14
  %v47 = vunpack.c.l.b16 %v15
  %v48 = vunpack.c.l.b16 %v16
  %v49 = vunpack.c.l.b16 %v17
  %v50 = vunpack.c.l.b16 %v18
  %v51 = vpack.c.b16 %v44, %v43
  %v52 = vpack.c.b16 %v46, %v45
  %v53 = vpack.c.b16 %v48, %v47
  %v54 = vpack.c.b16 %v50, %v49
  %v75 = vunpack.c.l.b16 %v19
  %v76 = vunpack.c.l.b16 %v20
  %v77 = vunpack.c.l.b16 %v21
  %v78 = vunpack.c.l.b16 %v22
  %v79 = vunpack.c.l.b16 %v23
  %v80 = vunpack.c.l.b16 %v24
  %v81 = vunpack.c.l.b16 %v25
  %v82 = vunpack.c.l.b16 %v26
  %v83 = vunpack.c.l.b16 %v27
  %v84 = vunpack.c.l.b16 %v28
  %v85 = vunpack.c.l.b16 %v29
  %v86 = vunpack.c.l.b16 %v30
  %v87 = vunpack.c.l.b16 %v31
  %v88 = vunpack.c.l.b16 %v32
  %v89 = vunpack.c.l.b16 %v33
  %v90 = vunpack.c.l.b16 %v34
  %v91 = vpack.c.b16 %v76, %v75
  %v92 = vpack.c.b16 %v78, %v77
  %v93 = vpack.c.b16 %v80, %v79
  %v94 = vpack.c.b16 %v82, %v81
  %v95 = vpack.c.b16 %v84, %v83
  %v96 = vpack.c.b16 %v86, %v85
  %v97 = vpack.c.b16 %v88, %v87
  %v98 = vpack.c.b16 %v90, %v89
  %107 = vmatpush.bf16.msra.mxu0 %v98
  %108 = vmatpush.bf16.msra.mxu0 %v97
  %109 = vmatpush.bf16.msra.mxu0 %v96
  %110 = vmatpush.bf16.msra.mxu0 %v95
  %111 = vmatpush.bf16.msra.mxu0 %v94
  %112 = vmatpush.bf16.msra.mxu0 %v93
  %113 = vmatpush.bf16.msra.mxu0 %v92
  %114 = vmatpush.bf16.msra.mxu0 %v91
  %115 = vmatmul.bf16.gmra.mxu0 %v51
  %v116 = vpop.f32.mrf.mxu0
  %v117 = vadd.f32 0.0, %v116
  %v118 = vpop.f32.mrf.mxu0
  %v119 = vadd.f32 0.0, %v118
  %120 = vmatmul.bf16.gmra.mxu0 %v52
  %v121 = vpop.f32.mrf.mxu0
  %v122 = vadd.f32 0.0, %v121
  %v123 = vpop.f32.mrf.mxu0
  %v124 = vadd.f32 0.0, %v123
  %125 = vmatmul.bf16.gmra.mxu0 %v53
  %v126 = vpop.f32.mrf.mxu0
  %v127 = vadd.f32 0.0, %v126
  %v128 = vpop.f32.mrf.mxu0
  %v129 = vadd.f32 0.0, %v128
  %130 = vmatmul.bf16.gmra.mxu0 %v54
  %v131 = vpop.f32.mrf.mxu0
  %v132 = vadd.f32 0.0, %v131
  %v133 = vpop.f32.mrf.mxu0
  %v134 = vadd.f32 0.0, %v133
  %135 = vdwg.mxu0
  %v136 = vpack.c.bf16 %v117, %v117
  %v137 = vpack.c.bf16 %v119, %v119
  %v138 = vpack.c.bf16 %v122, %v122
  %v139 = vpack.c.bf16 %v124, %v124
  %v140 = vpack.c.bf16 %v127, %v127
  %v141 = vpack.c.bf16 %v129, %v129
  %v142 = vpack.c.bf16 %v132, %v132
  %v143 = vpack.c.bf16 %v134, %v134
  %144 = vst [vmem:[%s2] sm:$0xf] %v136
  %145 = vst [vmem:[%s2 + $0x4] sm:$0xf] %v137
  %146 = vst [vmem:[%s2 + $0x8] sm:$0xf] %v138
  %147 = vst [vmem:[%s2 + $0xc] sm:$0xf] %v139
  %148 = vst [vmem:[%s2 + $0x10] sm:$0xf] %v140
  %149 = vst [vmem:[%s2 + $0x14] sm:$0xf] %v141
  %150 = vst [vmem:[%s2 + $0x18] sm:$0xf] %v142
  %151 = vst [vmem:[%s2 + $0x1c] sm:$0xf] %v143
  // Predicated region
  $region10: #{gcn_forward.4} parent=0 // pred_check
    _
  $region11: #{gcn_forward.4} parent=0 // pred_check_branch
    %153 = sbr.rel (0) target = $region13
  $region12: #{gcn_forward.4} parent=0 // pred_region
    _
  $region13: #{gcn_forward.4} parent=0 // pred_fallthru
    _
  // Predicated region
  $region14: #{gcn_forward.4} parent=0 // pred_check
    _
  $region15: #{gcn_forward.4} parent=0 // pred_check_branch
    %155 = sbr.rel (0) target = $region17
  $region16: #{gcn_forward.4} parent=0 // pred_region
    _
  $region17: #{gcn_forward.4} parent=0 // pred_fallthru
    _

// kernel: gcn_forward.7
$region0: #{gcn_forward.7}
  #allocation0 [shape = 'u32[]', space=smem, size = 0x4, offset = 0x4, fixed_abs, tag = 'smem constant byte address 0x4 - core index']
  #allocation1 [shape = 'u32[72,128]{1,0:T(1,128)}', space=vmem, size = 0x9000, scoped, tag = 'internal scratch']
  #allocation2 [shape = 'f32[64,128]{1,0:T(8,128)}', space=vmem, size = 0x8000, scoped, tag = 'scratch operand']
  %s0 = inlined_call_operand.vmem [shape: bf16[64,64], index: 0, kind: input, shape index: {}]
  %s1 = inlined_call_operand.vmem [shape: bf16[64,128], index: 1, kind: input, shape index: {}]
  %s2 = inlined_call_operand.vmem [shape: f32[1,128], index: 2, kind: input, shape index: {}]
  %s3 = inlined_call_operand.vmem [shape: f32[64,128], index: 3, kind: output, shape index: {}]
  %s4 = sld [smem:[#allocation0]]
  $region30: #{gcn_forward.7} parent=0
    _
  %s6 = ssub.s32 1, %s4
  %s7 = scalar_select 0, %s6, %s4
  // Predicated region
  $region2: #{gcn_forward.7} parent=0 // pred_check
    _
  $region3: #{gcn_forward.7} parent=0 // pred_check_branch
    %9 = sbr.rel (0) target = $region5
  $region4: #{gcn_forward.7} parent=0 // pred_region
    _
  $region5: #{gcn_forward.7} parent=0 // pred_fallthru
    _
  // Predicated region
  $region6: #{gcn_forward.7} parent=0 // pred_check
    _
  $region7: #{gcn_forward.7} parent=0 // pred_check_branch
    %11 = sbr.rel (0) target = $region9
  $region8: #{gcn_forward.7} parent=0 // pred_region
    _
  $region9: #{gcn_forward.7} parent=0 // pred_fallthru
    _
  // Predicated region
  $region10: #{gcn_forward.7} parent=0 // pred_check
    _
  $region11: #{gcn_forward.7} parent=0 // pred_check_branch
    %13 = sbr.rel (0) target = $region13
  $region12: #{gcn_forward.7} parent=0 // pred_region
    _
  $region13: #{gcn_forward.7} parent=0 // pred_fallthru
    _
  %p15 = scmp.eq.s32.totalorder 0, 0
  // Predicated region
  $region14: #{gcn_forward.7} parent=0 // pred_check
    %p16 = pneg %p15
  $region15: #{gcn_forward.7} parent=0 // pred_check_branch
    %18 = sbr.rel (%p16) target = $region17
  $region16: #{gcn_forward.7} parent=0 // pred_region
    %19 = vst [vmem:[#allocation2] sm:$0xff] 0.0
    %20 = vst [vmem:[#allocation2 + $0x8] sm:$0xff] 0.0
    %21 = vst [vmem:[#allocation2 + $0x10] sm:$0xff] 0.0
    %22 = vst [vmem:[#allocation2 + $0x18] sm:$0xff] 0.0
    %23 = vst [vmem:[#allocation2 + $0x20] sm:$0xff] 0.0
    %24 = vst [vmem:[#allocation2 + $0x28] sm:$0xff] 0.0
    %25 = vst [vmem:[#allocation2 + $0x30] sm:$0xff] 0.0
    %26 = vst [vmem:[#allocation2 + $0x38] sm:$0xff] 0.0
  $region17: #{gcn_forward.7} parent=0 // pred_fallthru
    _
  %v27 = vld [vmem:[#allocation2] sm:$0xff]
  %v28 = vld [vmem:[#allocation2 + $0x8] sm:$0xff]
  %v29 = vld [vmem:[#allocation2 + $0x10] sm:$0xff]
  %v30 = vld [vmem:[#allocation2 + $0x18] sm:$0xff]
  %v31 = vld [vmem:[#allocation2 + $0x20] sm:$0xff]
  %v32 = vld [vmem:[#allocation2 + $0x28] sm:$0xff]
  %v33 = vld [vmem:[#allocation2 + $0x30] sm:$0xff]
  %v34 = vld [vmem:[#allocation2 + $0x38] sm:$0xff]
  %v35 = vld [vmem:[%s0] sm:$0xf]
  %v36 = vld [vmem:[%s0 + $0x4] sm:$0xf]
  %v37 = vld [vmem:[%s0 + $0x8] sm:$0xf]
  %v38 = vld [vmem:[%s0 + $0xc] sm:$0xf]
  %v39 = vld [vmem:[%s0 + $0x10] sm:$0xf]
  %v40 = vld [vmem:[%s0 + $0x14] sm:$0xf]
  %v41 = vld [vmem:[%s0 + $0x18] sm:$0xf]
  %v42 = vld [vmem:[%s0 + $0x1c] sm:$0xf]
  %v43 = vld [vmem:[%s1] sm:$0xf]
  %v44 = vld [vmem:[%s1 + $0x4] sm:$0xf]
  %v45 = vld [vmem:[%s1 + $0x8] sm:$0xf]
  %v46 = vld [vmem:[%s1 + $0xc] sm:$0xf]
  %v47 = vld [vmem:[%s1 + $0x10] sm:$0xf]
  %v48 = vld [vmem:[%s1 + $0x14] sm:$0xf]
  %v49 = vld [vmem:[%s1 + $0x18] sm:$0xf]
  %v50 = vld [vmem:[%s1 + $0x1c] sm:$0xf]
  %v59 = vunpack.c.l.b16 %v35
  %v60 = vunpack.c.l.b16 %v36
  %v61 = vunpack.c.l.b16 %v37
  %v62 = vunpack.c.l.b16 %v38
  %v63 = vunpack.c.l.b16 %v39
  %v64 = vunpack.c.l.b16 %v40
  %v65 = vunpack.c.l.b16 %v41
  %v66 = vunpack.c.l.b16 %v42
  %v67 = vpack.c.b16 %v60, %v59
  %v68 = vpack.c.b16 %v62, %v61
  %v69 = vpack.c.b16 %v64, %v63
  %v70 = vpack.c.b16 %v66, %v65
  %v79 = vunpack.c.l.b16 %v43
  %v80 = vunpack.c.l.b16 %v44
  %v81 = vunpack.c.l.b16 %v45
  %v82 = vunpack.c.l.b16 %v46
  %v83 = vunpack.c.l.b16 %v47
  %v84 = vunpack.c.l.b16 %v48
  %v85 = vunpack.c.l.b16 %v49
  %v86 = vunpack.c.l.b16 %v50
  %v87 = vpack.c.b16 %v80, %v79
  %v88 = vpack.c.b16 %v82, %v81
  %v89 = vpack.c.b16 %v84, %v83
  %v90 = vpack.c.b16 %v86, %v85
  %vm95 = vcmask 523264
  %v97 = vsel %vm95, %v67, 0
  %v100 = vsel %vm95, %v68, 0
  %v103 = vsel %vm95, %v69, 0
  %v106 = vsel %vm95, %v70, 0
  %108 = vmatpush.bf16.msra.mxu0 0
  %109 = vmatpush.bf16.msra.mxu0 0
  %110 = vmatpush.bf16.msra.mxu0 0
  %111 = vmatpush.bf16.msra.mxu0 0
  %112 = vmatpush.bf16.msra.mxu0 %v90
  %113 = vmatpush.bf16.msra.mxu0 %v89
  %114 = vmatpush.bf16.msra.mxu0 %v88
  %115 = vmatpush.bf16.msra.mxu0 %v87
  %116 = vmatmul.bf16.gmra.mxu0 %v97
  %v117 = vpop.f32.mrf.mxu0
  %v118 = vadd.f32 0.0, %v117
  %v119 = vpop.f32.mrf.mxu0
  %v120 = vadd.f32 0.0, %v119
  %121 = vmatmul.bf16.gmra.mxu0 %v100
  %v122 = vpop.f32.mrf.mxu0
  %v123 = vadd.f32 0.0, %v122
  %v124 = vpop.f32.mrf.mxu0
  %v125 = vadd.f32 0.0, %v124
  %126 = vmatmul.bf16.gmra.mxu0 %v103
  %v127 = vpop.f32.mrf.mxu0
  %v128 = vadd.f32 0.0, %v127
  %v129 = vpop.f32.mrf.mxu0
  %v130 = vadd.f32 0.0, %v129
  %131 = vmatmul.bf16.gmra.mxu0 %v106
  %v132 = vpop.f32.mrf.mxu0
  %v133 = vadd.f32 0.0, %v132
  %v134 = vpop.f32.mrf.mxu0
  %v135 = vadd.f32 0.0, %v134
  %136 = vdwg.mxu0
  %v137 = vadd.f32 %v27, %v118
  %v138 = vadd.f32 %v28, %v120
  %v139 = vadd.f32 %v29, %v123
  %v140 = vadd.f32 %v30, %v125
  %v141 = vadd.f32 %v31, %v128
  %v142 = vadd.f32 %v32, %v130
  %v143 = vadd.f32 %v33, %v133
  %v144 = vadd.f32 %v34, %v135
  %145 = vst [vmem:[#allocation2] sm:$0xff] %v137
  %146 = vst [vmem:[#allocation2 + $0x8] sm:$0xff] %v138
  %147 = vst [vmem:[#allocation2 + $0x10] sm:$0xff] %v139
  %148 = vst [vmem:[#allocation2 + $0x18] sm:$0xff] %v140
  %149 = vst [vmem:[#allocation2 + $0x20] sm:$0xff] %v141
  %150 = vst [vmem:[#allocation2 + $0x28] sm:$0xff] %v142
  %151 = vst [vmem:[#allocation2 + $0x30] sm:$0xff] %v143
  %152 = vst [vmem:[#allocation2 + $0x38] sm:$0xff] %v144
  // Predicated region
  $region18: #{gcn_forward.7} parent=0 // pred_check
    %p153 = pneg %p15
  $region19: #{gcn_forward.7} parent=0 // pred_check_branch
    %155 = sbr.rel (%p153) target = $region21
  $region20: #{gcn_forward.7} parent=0 // pred_region
    %v156 = vld [vmem:[#allocation2] sm:$0xff]
    %v157 = vld [vmem:[#allocation2 + $0x8] sm:$0xff]
    %v158 = vld [vmem:[#allocation2 + $0x10] sm:$0xff]
    %v159 = vld [vmem:[#allocation2 + $0x18] sm:$0xff]
    %v160 = vld [vmem:[#allocation2 + $0x20] sm:$0xff]
    %v161 = vld [vmem:[#allocation2 + $0x28] sm:$0xff]
    %v162 = vld [vmem:[#allocation2 + $0x30] sm:$0xff]
    %v163 = vld [vmem:[#allocation2 + $0x38] sm:$0xff]
    %v164 = vld [vmem:[%s2] sm:$0x1]
    %v166 = vperm.slane %v164, 0
    %v168 = vadd.f32 %v156, %v166
    %v169 = vadd.f32 %v157, %v166
    %v170 = vadd.f32 %v158, %v166
    %v171 = vadd.f32 %v159, %v166
    %v172 = vadd.f32 %v160, %v166
    %v173 = vadd.f32 %v161, %v166
    %v174 = vadd.f32 %v162, %v166
    %v175 = vadd.f32 %v163, %v166
    %176 = vmax.xlane.f32.xlu0 %v168
    %v177 = vpop.xlane.xlu0 %176
    %178 = vmax.xlane.f32.xlu0 %v169
    %v179 = vpop.xlane.xlu0 %178
    %180 = vmax.xlane.f32.xlu0 %v170
    %v181 = vpop.xlane.xlu0 %180
    %182 = vmax.xlane.f32.xlu0 %v171
    %v183 = vpop.xlane.xlu0 %182
    %184 = vmax.xlane.f32.xlu0 %v172
    %v185 = vpop.xlane.xlu0 %184
    %186 = vmax.xlane.f32.xlu0 %v173
    %v187 = vpop.xlane.xlu0 %186
    %188 = vmax.xlane.f32.xlu0 %v174
    %v189 = vpop.xlane.xlu0 %188
    %190 = vmax.xlane.f32.xlu0 %v175
    %v191 = vpop.xlane.xlu0 %190
    %v192 = vsub.f32 %v168, %v177
    %v193 = vsub.f32 %v169, %v179
    %v194 = vsub.f32 %v170, %v181
    %v195 = vsub.f32 %v171, %v183
    %v196 = vsub.f32 %v172, %v185
    %v197 = vsub.f32 %v173, %v187
    %v198 = vsub.f32 %v174, %v189
    %v199 = vsub.f32 %v175, %v191
    %v200 = vmul.f32 %v192, 1.442695
    %v201 = vpow.pop %v200
    %v202 = vmul.f32 %v193, 1.442695
    %v203 = vpow.pop %v202
    %v204 = vmul.f32 %v194, 1.442695
    %v205 = vpow.pop %v204
    %v206 = vmul.f32 %v195, 1.442695
    %v207 = vpow.pop %v206
    %v208 = vmul.f32 %v196, 1.442695
    %v209 = vpow.pop %v208
    %v210 = vmul.f32 %v197, 1.442695
    %v211 = vpow.pop %v210
    %v212 = vmul.f32 %v198, 1.442695
    %v213 = vpow.pop %v212
    %v214 = vmul.f32 %v199, 1.442695
    %v215 = vpow.pop %v214
    %216 = vadd.xlane.f32.xlu0 %v201
    %v217 = vpop.xlane.xlu0 %216
    %218 = vadd.xlane.f32.xlu0 %v203
    %v219 = vpop.xlane.xlu0 %218
    %220 = vadd.xlane.f32.xlu0 %v205
    %v221 = vpop.xlane.xlu0 %220
    %222 = vadd.xlane.f32.xlu0 %v207
    %v223 = vpop.xlane.xlu0 %222
    %224 = vadd.xlane.f32.xlu0 %v209
    %v225 = vpop.xlane.xlu0 %224
    %226 = vadd.xlane.f32.xlu0 %v211
    %v227 = vpop.xlane.xlu0 %226
    %228 = vadd.xlane.f32.xlu0 %v213
    %v229 = vpop.xlane.xlu0 %228
    %230 = vadd.xlane.f32.xlu0 %v215
    %v231 = vpop.xlane.xlu0 %230
    %v232 = vlog2.pop %v217
    %v233 = vmul.f32 %v232, 0.6931472
    %v234 = vlog2.pop %v219
    %v235 = vmul.f32 %v234, 0.6931472
    %v236 = vlog2.pop %v221
    %v237 = vmul.f32 %v236, 0.6931472
    %v238 = vlog2.pop %v223
    %v239 = vmul.f32 %v238, 0.6931472
    %v240 = vlog2.pop %v225
    %v241 = vmul.f32 %v240, 0.6931472
    %v242 = vlog2.pop %v227
    %v243 = vmul.f32 %v242, 0.6931472
    %v244 = vlog2.pop %v229
    %v245 = vmul.f32 %v244, 0.6931472
    %v246 = vlog2.pop %v231
    %v247 = vmul.f32 %v246, 0.6931472
    %v248 = vsub.f32 %v192, %v233
    %v249 = vsub.f32 %v193, %v235
    %v250 = vsub.f32 %v194, %v237
    %v251 = vsub.f32 %v195, %v239
    %v252 = vsub.f32 %v196, %v241
    %v253 = vsub.f32 %v197, %v243
    %v254 = vsub.f32 %v198, %v245
    %v255 = vsub.f32 %v199, %v247
    %256 = vst [vmem:[%s3] sm:$0xff] %v248
    %257 = vst [vmem:[%s3 + $0x8] sm:$0xff] %v249
    %258 = vst [vmem:[%s3 + $0x10] sm:$0xff] %v250
    %259 = vst [vmem:[%s3 + $0x18] sm:$0xff] %v251
    %260 = vst [vmem:[%s3 + $0x20] sm:$0xff] %v252
    %261 = vst [vmem:[%s3 + $0x28] sm:$0xff] %v253
    %262 = vst [vmem:[%s3 + $0x30] sm:$0xff] %v254
    %263 = vst [vmem:[%s3 + $0x38] sm:$0xff] %v255
  $region21: #{gcn_forward.7} parent=0 // pred_fallthru
    _
  // Predicated region
  $region22: #{gcn_forward.7} parent=0 // pred_check
    _
  $region23: #{gcn_forward.7} parent=0 // pred_check_branch
    %265 = sbr.rel (0) target = $region25
  $region24: #{gcn_forward.7} parent=0 // pred_region
    _
  $region25: #{gcn_forward.7} parent=0 // pred_fallthru
    _
  // Predicated region
  $region26: #{gcn_forward.7} parent=0 // pred_check
    _
  $region27: #{gcn_forward.7} parent=0 // pred_check_branch
    %267 = sbr.rel (0) target = $region29
  $region28: #{gcn_forward.7} parent=0 // pred_region
    _
  $region29: #{gcn_forward.7} parent=0 // pred_fallthru
    _

</llo_original>
